<compile_context>
chip_gen: v7x
topology: tpu7x:2x2x1
jax: 0.10.0
libtpu: 0.0.40
codegen_flags: <defaults>
</compile_context>

<pallas_src>
import jax
import jax.numpy as jnp
from jax.experimental import pallas as pl
from jax.experimental.pallas import tpu as pltpu

# --- module-consistent small dims ---
SEQ = 8          # max_len
BATCH = 4        # batch_size
INP_DIMS = 16    # features / input_size
RNN_SIZE = 32    # hidden_size
CLASSES = 10

B_PAD = 8        # batch padded to f32 sublane count
OUT_PAD = 128    # == 4*RNN_SIZE; lane-dense width for gates & padded FC output

# --- parameter-slab row layout (all offsets sublane(8)-aligned) ---
R_WIH = 0                      # rows [0, 16)  : W_ih^T  (INP_DIMS, 128), g cols x2
R_WHH = R_WIH + INP_DIMS       # rows [16, 48) : W_hh^T  (RNN_SIZE, 128), g cols x2
R_B = 48                       # row  48       : b_ih+b_hh (1, 128), g cols x2
R_WFC = 56                     # rows [56, 88) : W_fc^T  (RNN_SIZE, 128), lane-padded
R_BFC = 88                     # row  88       : b_fc (1, 128), lane-padded
SLAB_ROWS = 96


def _make_kernel(seq, b_pad, feat, hidden):
    H = hidden

    def kernel(x_ref, p_ref, out_ref):
        # Static slices of the packed parameter slab.
        w_ih = p_ref[R_WIH:R_WIH + feat, :]        # (feat, 4H)
        w_hh = p_ref[R_WHH:R_WHH + H, :]           # (H, 4H)   loop-invariant
        b = p_ref[R_B:R_B + 1, :]                  # (1, 4H)
        w_fc = p_ref[R_WFC:R_WFC + H, :]           # (H, OUT_PAD)
        b_fc = p_ref[R_BFC:R_BFC + 1, :]           # (1, OUT_PAD)

        # Hoisted input projection for ALL timesteps (one well-shaped MXU op),
        # bias added once: (seq*b_pad, feat) @ (feat, 4H) + (1, 4H).
        xproj = (jnp.dot(x_ref[...], w_ih, preferred_element_type=jnp.float32)
                 + b)                               # (seq*b_pad, 4H)

        h = jnp.zeros((b_pad, H), jnp.float32)
        c = jnp.zeros((b_pad, H), jnp.float32)

        # Fully unrolled time recurrence (seq is tiny and static).
        for t in range(seq):
            gates = (xproj[t * b_pad:(t + 1) * b_pad, :]
                     + jnp.dot(h, w_hh, preferred_element_type=jnp.float32))
            # One whole-vreg EUP push per step; g-gate columns were pre-scaled
            # by 2, so tanh(x) is recovered as 2*sigmoid(2x) - 1 on the VPU.
            sig = jax.nn.sigmoid(gates)
            i = sig[:, 0 * H:1 * H]
            f = sig[:, 1 * H:2 * H]
            g = 2.0 * sig[:, 2 * H:3 * H] - 1.0
            o = sig[:, 3 * H:4 * H]
            c = f * c + i * g
            h = o * jnp.tanh(c)                     # second (last) EUP push

        # Final FC with lane-dense (padded) output: (b_pad, H) @ (H, 128).
        out_ref[...] = (jnp.dot(h, w_fc, preferred_element_type=jnp.float32)
                        + b_fc).astype(out_ref.dtype)

    return kernel


@jax.jit
def net_forward(x, param_slab):
    """x: (SEQ, BATCH, INP_DIMS) f32, param_slab: (96, 128) f32
    -> logits (BATCH, CLASSES) f32."""
    seq, batch, feat = x.shape
    hidden = RNN_SIZE

    # Pad batch to the f32 sublane count, flatten time into rows so the input
    # projection is a single matmul.
    x_flat = jnp.pad(x, ((0, 0), (0, B_PAD - batch), (0, 0))
                     ).reshape(seq * B_PAD, feat)

    kernel = _make_kernel(seq, B_PAD, feat, hidden)

    out_padded = pl.pallas_call(
        kernel,
        out_shape=jax.ShapeDtypeStruct((B_PAD, OUT_PAD), jnp.float32),
        grid=(1,),
        in_specs=[
            pl.BlockSpec((seq * B_PAD, feat), lambda i: (0, 0)),   # x (flat)
            pl.BlockSpec((SLAB_ROWS, OUT_PAD), lambda i: (0, 0)),  # param slab
        ],
        out_specs=pl.BlockSpec((B_PAD, OUT_PAD), lambda i: (0, 0)),
        compiler_params=pltpu.CompilerParams(
            dimension_semantics=("arbitrary",)),
    )(x_flat, param_slab)

    return out_padded[:batch, :CLASSES]


def init_params(key):
    """Deterministic PyTorch-layout parameters (nn.LSTMCell / nn.Linear)."""
    k1, k2, k3, k4, k5, k6 = jax.random.split(key, 6)
    s_lstm = 1.0 / jnp.sqrt(RNN_SIZE)
    w_ih = jax.random.uniform(k1, (4 * RNN_SIZE, INP_DIMS), jnp.float32,
                              -s_lstm, s_lstm)
    w_hh = jax.random.uniform(k2, (4 * RNN_SIZE, RNN_SIZE), jnp.float32,
                              -s_lstm, s_lstm)
    b_ih = jax.random.uniform(k3, (4 * RNN_SIZE,), jnp.float32, -s_lstm, s_lstm)
    b_hh = jax.random.uniform(k4, (4 * RNN_SIZE,), jnp.float32, -s_lstm, s_lstm)
    s_fc = 1.0 / jnp.sqrt(RNN_SIZE)
    w_fc = jax.random.uniform(k5, (CLASSES, RNN_SIZE), jnp.float32, -s_fc, s_fc)
    b_fc = jax.random.uniform(k6, (CLASSES,), jnp.float32, -s_fc, s_fc)
    return (w_ih, w_hh, b_ih, b_hh, w_fc, b_fc)


def prepare_kernel_params(torch_params):
    """One-time prep: transpose weights, combine biases, pre-scale the g-gate
    columns by 2 (tanh(x) = 2*sigmoid(2x) - 1), lane-pad the FC params, and
    pack everything into a single (SLAB_ROWS, 128) f32 slab."""
    w_ih, w_hh, b_ih, b_hh, w_fc, b_fc = torch_params
    H = RNN_SIZE

    w_ih_t = w_ih.T                                   # (INP_DIMS, 4H)
    w_hh_t = w_hh.T                                   # (H, 4H)
    b = (b_ih + b_hh)[None, :]                        # (1, 4H)

    gscale = jnp.ones((1, 4 * H), jnp.float32).at[:, 2 * H:3 * H].set(2.0)
    w_ih_t = w_ih_t * gscale
    w_hh_t = w_hh_t * gscale
    b = b * gscale

    w_fc_p = jnp.zeros((H, OUT_PAD), jnp.float32).at[:, :CLASSES].set(w_fc.T)
    b_fc_p = jnp.zeros((1, OUT_PAD), jnp.float32).at[:, :CLASSES].set(b_fc)

    slab = jnp.zeros((SLAB_ROWS, 4 * H), jnp.float32)
    slab = slab.at[R_WIH:R_WIH + INP_DIMS, :].set(w_ih_t)
    slab = slab.at[R_WHH:R_WHH + H, :].set(w_hh_t)
    slab = slab.at[R_B, :].set(b[0])
    slab = slab.at[R_WFC:R_WFC + H, :].set(w_fc_p)
    slab = slab.at[R_BFC, :].set(b_fc_p[0])
    return slab


def reference_forward(x, torch_params):
    """Pure-JAX reference replicating the PyTorch forward exactly."""
    w_ih, w_hh, b_ih, b_hh, w_fc, b_fc = torch_params
    batch = x.shape[1]
    H = RNN_SIZE
    h = jnp.zeros((batch, H), jnp.float32)
    c = jnp.zeros((batch, H), jnp.float32)
    for t in range(x.shape[0]):
        gates = x[t] @ w_ih.T + h @ w_hh.T + b_ih + b_hh
        i = jax.nn.sigmoid(gates[:, 0 * H:1 * H])
        f = jax.nn.sigmoid(gates[:, 1 * H:2 * H])
        g = jnp.tanh(gates[:, 2 * H:3 * H])
        o = jax.nn.sigmoid(gates[:, 3 * H:4 * H])
        c = f * c + i * g
        h = o * jnp.tanh(c)
    return h @ w_fc.T + b_fc


if __name__ == "__main__":
    key = jax.random.PRNGKey(0)
    kx, kp = jax.random.split(key)
    x = jax.random.normal(kx, (SEQ, BATCH, INP_DIMS), jnp.float32)

    torch_params = init_params(kp)
    param_slab = prepare_kernel_params(torch_params)   # built once

    out = net_forward(x, param_slab)
    out = jax.block_until_ready(out)

    ref = reference_forward(x, torch_params)
    assert out.shape == (BATCH, CLASSES)
    assert jnp.allclose(out, ref, atol=1e-4, rtol=1e-4), "mismatch vs reference"

    print("KERNEL_OK")
</pallas_src>

<mosaic_0001>
module attributes {stable_mosaic.version = 11 : i64} {
  func.func @kernel(%arg0: i32, %arg1: memref<64x16xf32, #tpu.memory_space<vmem>>, %arg2: memref<96x128xf32, #tpu.memory_space<vmem>>, %arg3: memref<8x128xf32, #tpu.memory_space<vmem>>) attributes {dimension_semantics = [#tpu.dimension_semantics<arbitrary>], iteration_bounds = array<i64: 1>, scalar_prefetch = 0 : i64, scratch_operands = 0 : i64, tpu.core_type = #tpu.core_type<tc>, window_params = [{pipeline_mode = #tpu.pipeline_mode<synchronous>, transform_indices = @transform_0, window_bounds = array<i64: 64, 16>}, {pipeline_mode = #tpu.pipeline_mode<synchronous>, transform_indices = @transform_1, window_bounds = array<i64: 96, 128>}, {pipeline_mode = #tpu.pipeline_mode<synchronous>, transform_indices = @transform_2, window_bounds = array<i64: 8, 128>}]} {
    %c0 = arith.constant 0 : index
    %c0_0 = arith.constant 0 : index
    %0 = vector.load %arg2[%c0, %c0_0] : memref<96x128xf32, #tpu.memory_space<vmem>>, vector<16x128xf32>
    %c16 = arith.constant 16 : index
    %c0_1 = arith.constant 0 : index
    %1 = vector.load %arg2[%c16, %c0_1] : memref<96x128xf32, #tpu.memory_space<vmem>>, vector<32x128xf32>
    %c48 = arith.constant 48 : index
    %c0_2 = arith.constant 0 : index
    %2 = vector.load %arg2[%c48, %c0_2] : memref<96x128xf32, #tpu.memory_space<vmem>>, vector<1x128xf32>
    %c56 = arith.constant 56 : index
    %c0_3 = arith.constant 0 : index
    %3 = vector.load %arg2[%c56, %c0_3] : memref<96x128xf32, #tpu.memory_space<vmem>>, vector<32x128xf32>
    %c88 = arith.constant 88 : index
    %c0_4 = arith.constant 0 : index
    %4 = vector.load %arg2[%c88, %c0_4] : memref<96x128xf32, #tpu.memory_space<vmem>>, vector<1x128xf32>
    %c0_5 = arith.constant 0 : index
    %c0_6 = arith.constant 0 : index
    %5 = vector.load %arg1[%c0_5, %c0_6] : memref<64x16xf32, #tpu.memory_space<vmem>>, vector<64x16xf32>
    %cst = arith.constant dense<0.000000e+00> : vector<64x128xf32>
    %6 = tpu.matmul %5, %0, %cst {dimension_numbers = #tpu.dot_dimension_numbers<[1], [0], [0], [1], [0, 0, 1, 1], [], []>} : vector<64x16xf32>, vector<16x128xf32>, vector<64x128xf32> -> vector<64x128xf32>
    %7 = vector.broadcast %2 : vector<1x128xf32> to vector<64x128xf32>
    %8 = arith.addf %6, %7 : vector<64x128xf32>
    %cst_7 = arith.constant 0.000000e+00 : f32
    %9 = vector.broadcast %cst_7 : f32 to vector<8x32xf32>
    %cst_8 = arith.constant 0.000000e+00 : f32
    %10 = vector.broadcast %cst_8 : f32 to vector<8x32xf32>
    %11 = vector.extract_strided_slice %8 {offsets = [0, 0], sizes = [8, 128], strides = [1, 1]} : vector<64x128xf32> to vector<8x128xf32>
    %cst_9 = arith.constant dense<0.000000e+00> : vector<8x128xf32>
    %12 = tpu.matmul %9, %1, %cst_9 {dimension_numbers = #tpu.dot_dimension_numbers<[1], [0], [0], [1], [0, 0, 1, 1], [], []>} : vector<8x32xf32>, vector<32x128xf32>, vector<8x128xf32> -> vector<8x128xf32>
    %13 = arith.addf %11, %12 : vector<8x128xf32>
    %14 = arith.negf %13 : vector<8x128xf32>
    %15 = math.exp %14 : vector<8x128xf32>
    %cst_10 = arith.constant 1.000000e+00 : f32
    %16 = vector.broadcast %cst_10 : f32 to vector<8x128xf32>
    %17 = arith.addf %16, %15 : vector<8x128xf32>
    %18 = arith.divf %16, %17 : vector<8x128xf32>
    %19 = vector.extract_strided_slice %18 {offsets = [0, 0], sizes = [8, 32], strides = [1, 1]} : vector<8x128xf32> to vector<8x32xf32>
    %20 = vector.extract_strided_slice %18 {offsets = [0, 32], sizes = [8, 32], strides = [1, 1]} : vector<8x128xf32> to vector<8x32xf32>
    %21 = vector.extract_strided_slice %18 {offsets = [0, 64], sizes = [8, 32], strides = [1, 1]} : vector<8x128xf32> to vector<8x32xf32>
    %cst_11 = arith.constant 2.000000e+00 : f32
    %22 = vector.broadcast %cst_11 : f32 to vector<8x32xf32>
    %23 = arith.mulf %22, %21 : vector<8x32xf32>
    %cst_12 = arith.constant 1.000000e+00 : f32
    %24 = vector.broadcast %cst_12 : f32 to vector<8x32xf32>
    %25 = arith.subf %23, %24 : vector<8x32xf32>
    %26 = vector.extract_strided_slice %18 {offsets = [0, 96], sizes = [8, 32], strides = [1, 1]} : vector<8x128xf32> to vector<8x32xf32>
    %27 = arith.mulf %20, %10 : vector<8x32xf32>
    %28 = arith.mulf %19, %25 : vector<8x32xf32>
    %29 = arith.addf %27, %28 : vector<8x32xf32>
    %30 = math.tanh %29 : vector<8x32xf32>
    %31 = arith.mulf %26, %30 : vector<8x32xf32>
    %32 = vector.extract_strided_slice %8 {offsets = [8, 0], sizes = [8, 128], strides = [1, 1]} : vector<64x128xf32> to vector<8x128xf32>
    %cst_13 = arith.constant dense<0.000000e+00> : vector<8x128xf32>
    %33 = tpu.matmul %31, %1, %cst_13 {dimension_numbers = #tpu.dot_dimension_numbers<[1], [0], [0], [1], [0, 0, 1, 1], [], []>} : vector<8x32xf32>, vector<32x128xf32>, vector<8x128xf32> -> vector<8x128xf32>
    %34 = arith.addf %32, %33 : vector<8x128xf32>
    %35 = arith.negf %34 : vector<8x128xf32>
    %36 = math.exp %35 : vector<8x128xf32>
    %cst_14 = arith.constant 1.000000e+00 : f32
    %37 = vector.broadcast %cst_14 : f32 to vector<8x128xf32>
    %38 = arith.addf %37, %36 : vector<8x128xf32>
    %39 = arith.divf %37, %38 : vector<8x128xf32>
    %40 = vector.extract_strided_slice %39 {offsets = [0, 0], sizes = [8, 32], strides = [1, 1]} : vector<8x128xf32> to vector<8x32xf32>
    %41 = vector.extract_strided_slice %39 {offsets = [0, 32], sizes = [8, 32], strides = [1, 1]} : vector<8x128xf32> to vector<8x32xf32>
    %42 = vector.extract_strided_slice %39 {offsets = [0, 64], sizes = [8, 32], strides = [1, 1]} : vector<8x128xf32> to vector<8x32xf32>
    %cst_15 = arith.constant 2.000000e+00 : f32
    %43 = vector.broadcast %cst_15 : f32 to vector<8x32xf32>
    %44 = arith.mulf %43, %42 : vector<8x32xf32>
    %cst_16 = arith.constant 1.000000e+00 : f32
    %45 = vector.broadcast %cst_16 : f32 to vector<8x32xf32>
    %46 = arith.subf %44, %45 : vector<8x32xf32>
    %47 = vector.extract_strided_slice %39 {offsets = [0, 96], sizes = [8, 32], strides = [1, 1]} : vector<8x128xf32> to vector<8x32xf32>
    %48 = arith.mulf %41, %29 : vector<8x32xf32>
    %49 = arith.mulf %40, %46 : vector<8x32xf32>
    %50 = arith.addf %48, %49 : vector<8x32xf32>
    %51 = math.tanh %50 : vector<8x32xf32>
    %52 = arith.mulf %47, %51 : vector<8x32xf32>
    %53 = vector.extract_strided_slice %8 {offsets = [16, 0], sizes = [8, 128], strides = [1, 1]} : vector<64x128xf32> to vector<8x128xf32>
    %cst_17 = arith.constant dense<0.000000e+00> : vector<8x128xf32>
    %54 = tpu.matmul %52, %1, %cst_17 {dimension_numbers = #tpu.dot_dimension_numbers<[1], [0], [0], [1], [0, 0, 1, 1], [], []>} : vector<8x32xf32>, vector<32x128xf32>, vector<8x128xf32> -> vector<8x128xf32>
    %55 = arith.addf %53, %54 : vector<8x128xf32>
    %56 = arith.negf %55 : vector<8x128xf32>
    %57 = math.exp %56 : vector<8x128xf32>
    %cst_18 = arith.constant 1.000000e+00 : f32
    %58 = vector.broadcast %cst_18 : f32 to vector<8x128xf32>
    %59 = arith.addf %58, %57 : vector<8x128xf32>
    %60 = arith.divf %58, %59 : vector<8x128xf32>
    %61 = vector.extract_strided_slice %60 {offsets = [0, 0], sizes = [8, 32], strides = [1, 1]} : vector<8x128xf32> to vector<8x32xf32>
    %62 = vector.extract_strided_slice %60 {offsets = [0, 32], sizes = [8, 32], strides = [1, 1]} : vector<8x128xf32> to vector<8x32xf32>
    %63 = vector.extract_strided_slice %60 {offsets = [0, 64], sizes = [8, 32], strides = [1, 1]} : vector<8x128xf32> to vector<8x32xf32>
    %cst_19 = arith.constant 2.000000e+00 : f32
    %64 = vector.broadcast %cst_19 : f32 to vector<8x32xf32>
    %65 = arith.mulf %64, %63 : vector<8x32xf32>
    %cst_20 = arith.constant 1.000000e+00 : f32
    %66 = vector.broadcast %cst_20 : f32 to vector<8x32xf32>
    %67 = arith.subf %65, %66 : vector<8x32xf32>
    %68 = vector.extract_strided_slice %60 {offsets = [0, 96], sizes = [8, 32], strides = [1, 1]} : vector<8x128xf32> to vector<8x32xf32>
    %69 = arith.mulf %62, %50 : vector<8x32xf32>
    %70 = arith.mulf %61, %67 : vector<8x32xf32>
    %71 = arith.addf %69, %70 : vector<8x32xf32>
    %72 = math.tanh %71 : vector<8x32xf32>
    %73 = arith.mulf %68, %72 : vector<8x32xf32>
    %74 = vector.extract_strided_slice %8 {offsets = [24, 0], sizes = [8, 128], strides = [1, 1]} : vector<64x128xf32> to vector<8x128xf32>
    %cst_21 = arith.constant dense<0.000000e+00> : vector<8x128xf32>
    %75 = tpu.matmul %73, %1, %cst_21 {dimension_numbers = #tpu.dot_dimension_numbers<[1], [0], [0], [1], [0, 0, 1, 1], [], []>} : vector<8x32xf32>, vector<32x128xf32>, vector<8x128xf32> -> vector<8x128xf32>
    %76 = arith.addf %74, %75 : vector<8x128xf32>
    %77 = arith.negf %76 : vector<8x128xf32>
    %78 = math.exp %77 : vector<8x128xf32>
    %cst_22 = arith.constant 1.000000e+00 : f32
    %79 = vector.broadcast %cst_22 : f32 to vector<8x128xf32>
    %80 = arith.addf %79, %78 : vector<8x128xf32>
    %81 = arith.divf %79, %80 : vector<8x128xf32>
    %82 = vector.extract_strided_slice %81 {offsets = [0, 0], sizes = [8, 32], strides = [1, 1]} : vector<8x128xf32> to vector<8x32xf32>
    %83 = vector.extract_strided_slice %81 {offsets = [0, 32], sizes = [8, 32], strides = [1, 1]} : vector<8x128xf32> to vector<8x32xf32>
    %84 = vector.extract_strided_slice %81 {offsets = [0, 64], sizes = [8, 32], strides = [1, 1]} : vector<8x128xf32> to vector<8x32xf32>
    %cst_23 = arith.constant 2.000000e+00 : f32
    %85 = vector.broadcast %cst_23 : f32 to vector<8x32xf32>
    %86 = arith.mulf %85, %84 : vector<8x32xf32>
    %cst_24 = arith.constant 1.000000e+00 : f32
    %87 = vector.broadcast %cst_24 : f32 to vector<8x32xf32>
    %88 = arith.subf %86, %87 : vector<8x32xf32>
    %89 = vector.extract_strided_slice %81 {offsets = [0, 96], sizes = [8, 32], strides = [1, 1]} : vector<8x128xf32> to vector<8x32xf32>
    %90 = arith.mulf %83, %71 : vector<8x32xf32>
    %91 = arith.mulf %82, %88 : vector<8x32xf32>
    %92 = arith.addf %90, %91 : vector<8x32xf32>
    %93 = math.tanh %92 : vector<8x32xf32>
    %94 = arith.mulf %89, %93 : vector<8x32xf32>
    %95 = vector.extract_strided_slice %8 {offsets = [32, 0], sizes = [8, 128], strides = [1, 1]} : vector<64x128xf32> to vector<8x128xf32>
    %cst_25 = arith.constant dense<0.000000e+00> : vector<8x128xf32>
    %96 = tpu.matmul %94, %1, %cst_25 {dimension_numbers = #tpu.dot_dimension_numbers<[1], [0], [0], [1], [0, 0, 1, 1], [], []>} : vector<8x32xf32>, vector<32x128xf32>, vector<8x128xf32> -> vector<8x128xf32>
    %97 = arith.addf %95, %96 : vector<8x128xf32>
    %98 = arith.negf %97 : vector<8x128xf32>
    %99 = math.exp %98 : vector<8x128xf32>
    %cst_26 = arith.constant 1.000000e+00 : f32
    %100 = vector.broadcast %cst_26 : f32 to vector<8x128xf32>
    %101 = arith.addf %100, %99 : vector<8x128xf32>
    %102 = arith.divf %100, %101 : vector<8x128xf32>
    %103 = vector.extract_strided_slice %102 {offsets = [0, 0], sizes = [8, 32], strides = [1, 1]} : vector<8x128xf32> to vector<8x32xf32>
    %104 = vector.extract_strided_slice %102 {offsets = [0, 32], sizes = [8, 32], strides = [1, 1]} : vector<8x128xf32> to vector<8x32xf32>
    %105 = vector.extract_strided_slice %102 {offsets = [0, 64], sizes = [8, 32], strides = [1, 1]} : vector<8x128xf32> to vector<8x32xf32>
    %cst_27 = arith.constant 2.000000e+00 : f32
    %106 = vector.broadcast %cst_27 : f32 to vector<8x32xf32>
    %107 = arith.mulf %106, %105 : vector<8x32xf32>
    %cst_28 = arith.constant 1.000000e+00 : f32
    %108 = vector.broadcast %cst_28 : f32 to vector<8x32xf32>
    %109 = arith.subf %107, %108 : vector<8x32xf32>
    %110 = vector.extract_strided_slice %102 {offsets = [0, 96], sizes = [8, 32], strides = [1, 1]} : vector<8x128xf32> to vector<8x32xf32>
    %111 = arith.mulf %104, %92 : vector<8x32xf32>
    %112 = arith.mulf %103, %109 : vector<8x32xf32>
    %113 = arith.addf %111, %112 : vector<8x32xf32>
    %114 = math.tanh %113 : vector<8x32xf32>
    %115 = arith.mulf %110, %114 : vector<8x32xf32>
    %116 = vector.extract_strided_slice %8 {offsets = [40, 0], sizes = [8, 128], strides = [1, 1]} : vector<64x128xf32> to vector<8x128xf32>
    %cst_29 = arith.constant dense<0.000000e+00> : vector<8x128xf32>
    %117 = tpu.matmul %115, %1, %cst_29 {dimension_numbers = #tpu.dot_dimension_numbers<[1], [0], [0], [1], [0, 0, 1, 1], [], []>} : vector<8x32xf32>, vector<32x128xf32>, vector<8x128xf32> -> vector<8x128xf32>
    %118 = arith.addf %116, %117 : vector<8x128xf32>
    %119 = arith.negf %118 : vector<8x128xf32>
    %120 = math.exp %119 : vector<8x128xf32>
    %cst_30 = arith.constant 1.000000e+00 : f32
    %121 = vector.broadcast %cst_30 : f32 to vector<8x128xf32>
    %122 = arith.addf %121, %120 : vector<8x128xf32>
    %123 = arith.divf %121, %122 : vector<8x128xf32>
    %124 = vector.extract_strided_slice %123 {offsets = [0, 0], sizes = [8, 32], strides = [1, 1]} : vector<8x128xf32> to vector<8x32xf32>
    %125 = vector.extract_strided_slice %123 {offsets = [0, 32], sizes = [8, 32], strides = [1, 1]} : vector<8x128xf32> to vector<8x32xf32>
    %126 = vector.extract_strided_slice %123 {offsets = [0, 64], sizes = [8, 32], strides = [1, 1]} : vector<8x128xf32> to vector<8x32xf32>
    %cst_31 = arith.constant 2.000000e+00 : f32
    %127 = vector.broadcast %cst_31 : f32 to vector<8x32xf32>
    %128 = arith.mulf %127, %126 : vector<8x32xf32>
    %cst_32 = arith.constant 1.000000e+00 : f32
    %129 = vector.broadcast %cst_32 : f32 to vector<8x32xf32>
    %130 = arith.subf %128, %129 : vector<8x32xf32>
    %131 = vector.extract_strided_slice %123 {offsets = [0, 96], sizes = [8, 32], strides = [1, 1]} : vector<8x128xf32> to vector<8x32xf32>
    %132 = arith.mulf %125, %113 : vector<8x32xf32>
    %133 = arith.mulf %124, %130 : vector<8x32xf32>
    %134 = arith.addf %132, %133 : vector<8x32xf32>
    %135 = math.tanh %134 : vector<8x32xf32>
    %136 = arith.mulf %131, %135 : vector<8x32xf32>
    %137 = vector.extract_strided_slice %8 {offsets = [48, 0], sizes = [8, 128], strides = [1, 1]} : vector<64x128xf32> to vector<8x128xf32>
    %cst_33 = arith.constant dense<0.000000e+00> : vector<8x128xf32>
    %138 = tpu.matmul %136, %1, %cst_33 {dimension_numbers = #tpu.dot_dimension_numbers<[1], [0], [0], [1], [0, 0, 1, 1], [], []>} : vector<8x32xf32>, vector<32x128xf32>, vector<8x128xf32> -> vector<8x128xf32>
    %139 = arith.addf %137, %138 : vector<8x128xf32>
    %140 = arith.negf %139 : vector<8x128xf32>
    %141 = math.exp %140 : vector<8x128xf32>
    %cst_34 = arith.constant 1.000000e+00 : f32
    %142 = vector.broadcast %cst_34 : f32 to vector<8x128xf32>
    %143 = arith.addf %142, %141 : vector<8x128xf32>
    %144 = arith.divf %142, %143 : vector<8x128xf32>
    %145 = vector.extract_strided_slice %144 {offsets = [0, 0], sizes = [8, 32], strides = [1, 1]} : vector<8x128xf32> to vector<8x32xf32>
    %146 = vector.extract_strided_slice %144 {offsets = [0, 32], sizes = [8, 32], strides = [1, 1]} : vector<8x128xf32> to vector<8x32xf32>
    %147 = vector.extract_strided_slice %144 {offsets = [0, 64], sizes = [8, 32], strides = [1, 1]} : vector<8x128xf32> to vector<8x32xf32>
    %cst_35 = arith.constant 2.000000e+00 : f32
    %148 = vector.broadcast %cst_35 : f32 to vector<8x32xf32>
    %149 = arith.mulf %148, %147 : vector<8x32xf32>
    %cst_36 = arith.constant 1.000000e+00 : f32
    %150 = vector.broadcast %cst_36 : f32 to vector<8x32xf32>
    %151 = arith.subf %149, %150 : vector<8x32xf32>
    %152 = vector.extract_strided_slice %144 {offsets = [0, 96], sizes = [8, 32], strides = [1, 1]} : vector<8x128xf32> to vector<8x32xf32>
    %153 = arith.mulf %146, %134 : vector<8x32xf32>
    %154 = arith.mulf %145, %151 : vector<8x32xf32>
    %155 = arith.addf %153, %154 : vector<8x32xf32>
    %156 = math.tanh %155 : vector<8x32xf32>
    %157 = arith.mulf %152, %156 : vector<8x32xf32>
    %158 = vector.extract_strided_slice %8 {offsets = [56, 0], sizes = [8, 128], strides = [1, 1]} : vector<64x128xf32> to vector<8x128xf32>
    %cst_37 = arith.constant dense<0.000000e+00> : vector<8x128xf32>
    %159 = tpu.matmul %157, %1, %cst_37 {dimension_numbers = #tpu.dot_dimension_numbers<[1], [0], [0], [1], [0, 0, 1, 1], [], []>} : vector<8x32xf32>, vector<32x128xf32>, vector<8x128xf32> -> vector<8x128xf32>
    %160 = arith.addf %158, %159 : vector<8x128xf32>
    %161 = arith.negf %160 : vector<8x128xf32>
    %162 = math.exp %161 : vector<8x128xf32>
    %cst_38 = arith.constant 1.000000e+00 : f32
    %163 = vector.broadcast %cst_38 : f32 to vector<8x128xf32>
    %164 = arith.addf %163, %162 : vector<8x128xf32>
    %165 = arith.divf %163, %164 : vector<8x128xf32>
    %166 = vector.extract_strided_slice %165 {offsets = [0, 0], sizes = [8, 32], strides = [1, 1]} : vector<8x128xf32> to vector<8x32xf32>
    %167 = vector.extract_strided_slice %165 {offsets = [0, 32], sizes = [8, 32], strides = [1, 1]} : vector<8x128xf32> to vector<8x32xf32>
    %168 = vector.extract_strided_slice %165 {offsets = [0, 64], sizes = [8, 32], strides = [1, 1]} : vector<8x128xf32> to vector<8x32xf32>
    %cst_39 = arith.constant 2.000000e+00 : f32
    %169 = vector.broadcast %cst_39 : f32 to vector<8x32xf32>
    %170 = arith.mulf %169, %168 : vector<8x32xf32>
    %cst_40 = arith.constant 1.000000e+00 : f32
    %171 = vector.broadcast %cst_40 : f32 to vector<8x32xf32>
    %172 = arith.subf %170, %171 : vector<8x32xf32>
    %173 = vector.extract_strided_slice %165 {offsets = [0, 96], sizes = [8, 32], strides = [1, 1]} : vector<8x128xf32> to vector<8x32xf32>
    %174 = arith.mulf %167, %155 : vector<8x32xf32>
    %175 = arith.mulf %166, %172 : vector<8x32xf32>
    %176 = arith.addf %174, %175 : vector<8x32xf32>
    %177 = math.tanh %176 : vector<8x32xf32>
    %178 = arith.mulf %173, %177 : vector<8x32xf32>
    %cst_41 = arith.constant dense<0.000000e+00> : vector<8x128xf32>
    %179 = tpu.matmul %178, %3, %cst_41 {dimension_numbers = #tpu.dot_dimension_numbers<[1], [0], [0], [1], [0, 0, 1, 1], [], []>} : vector<8x32xf32>, vector<32x128xf32>, vector<8x128xf32> -> vector<8x128xf32>
    %180 = vector.broadcast %4 : vector<1x128xf32> to vector<8x128xf32>
    %181 = arith.addf %179, %180 : vector<8x128xf32>
    %c0_42 = arith.constant 0 : index
    %c0_43 = arith.constant 0 : index
    %182 = vector.load %arg3[%c0_42, %c0_43] : memref<8x128xf32, #tpu.memory_space<vmem>>, vector<8x128xf32>
    tpu.vector_store %arg3[%c0_42, %c0_43], %181 {strides = array<i32>} : memref<8x128xf32, #tpu.memory_space<vmem>>, vector<8x128xf32>,
    return
  }
  func.func @transform_0(%arg0: i32) -> (i32, i32) {
    %c0_i32 = arith.constant 0 : i32
    %c0_i32_0 = arith.constant 0 : i32
    %c0_i32_1 = arith.constant 0 : i32
    return %c0_i32, %c0_i32_0 : i32, i32
  }
  func.func @transform_1(%arg0: i32) -> (i32, i32) {
    %c0_i32 = arith.constant 0 : i32
    %c0_i32_0 = arith.constant 0 : i32
    %c0_i32_1 = arith.constant 0 : i32
    return %c0_i32, %c0_i32_0 : i32, i32
  }
  func.func @transform_2(%arg0: i32) -> (i32, i32) {
    %c0_i32 = arith.constant 0 : i32
    %c0_i32_0 = arith.constant 0 : i32
    %c0_i32_1 = arith.constant 0 : i32
    return %c0_i32, %c0_i32_0 : i32, i32
  }
}

</mosaic_0001>

<llo_original>
// kernel: net_forward.1
$region0: #{net_forward.1}
  #allocation0 [shape = 'u32[]', space=smem, size = 0x4, offset = 0x4, fixed_abs, tag = 'smem constant byte address 0x4 - core index']
  #allocation1 [shape = 'u32[144,128]{1,0:T(1,128)}', space=vmem, size = 0x12000, scoped, tag = 'internal scratch']
  %s0 = inlined_call_operand.vmem [shape: f32[64,16], index: 0, kind: input, shape index: {}]
  %s1 = inlined_call_operand.vmem [shape: f32[96,128], index: 1, kind: input, shape index: {}]
  %s2 = inlined_call_operand.vmem [shape: f32[8,128], index: 2, kind: output, shape index: {}]
  %s3 = sld [smem:[#allocation0]]
  $region18: #{net_forward.1} parent=0
    _
  %s5 = ssub.s32 1, %s3
  %s6 = scalar_select 0, %s5, %s3
  // Predicated region
  $region2: #{net_forward.1} parent=0 // pred_check
    _
  $region3: #{net_forward.1} parent=0 // pred_check_branch
    %8 = sbr.rel (0) target = $region5
  $region4: #{net_forward.1} parent=0 // pred_region
    _
  $region5: #{net_forward.1} parent=0 // pred_fallthru
    _
  // Predicated region
  $region6: #{net_forward.1} parent=0 // pred_check
    _
  $region7: #{net_forward.1} parent=0 // pred_check_branch
    %10 = sbr.rel (0) target = $region9
  $region8: #{net_forward.1} parent=0 // pred_region
    _
  $region9: #{net_forward.1} parent=0 // pred_fallthru
    _
  %v11 = vld [vmem:[%s1] sm:$0xff]
  %v12 = vld [vmem:[%s1 + $0x8] sm:$0xff]
  %v13 = vld [vmem:[%s1 + $0x10] sm:$0xff]
  %v14 = vld [vmem:[%s1 + $0x18] sm:$0xff]
  %v15 = vld [vmem:[%s1 + $0x20] sm:$0xff]
  %v16 = vld [vmem:[%s1 + $0x28] sm:$0xff]
  %v17 = vld [vmem:[%s1 + $0x30] sm:$0x1]
  %v18 = vld [vmem:[%s1 + $0x38] sm:$0xff]
  %v19 = vld [vmem:[%s1 + $0x40] sm:$0xff]
  %v20 = vld [vmem:[%s1 + $0x48] sm:$0xff]
  %v21 = vld [vmem:[%s1 + $0x50] sm:$0xff]
  %v22 = vld [vmem:[%s1 + $0x58] sm:$0x1]
  %v23 = vld [vmem:[%s0] sm:$0xff]
  %v24 = vld [vmem:[%s0 + $0x8] sm:$0xff]
  %v25 = vld [vmem:[%s0 + $0x10] sm:$0xff]
  %v26 = vld [vmem:[%s0 + $0x18] sm:$0xff]
  %v27 = vld [vmem:[%s0 + $0x20] sm:$0xff]
  %v28 = vld [vmem:[%s0 + $0x28] sm:$0xff]
  %v29 = vld [vmem:[%s0 + $0x30] sm:$0xff]
  %v30 = vld [vmem:[%s0 + $0x38] sm:$0xff]
  %v31 = vlaneseq
  %v32 = vshrl.u32 %v31, 7
  %v33 = vsub.s32 0, %v32
  %v34 = vrot.slane %v17, %v33
  %vm35 = vcmask 130048
  %v37 = vsel %vm35, %v23, 0
  %v40 = vsel %vm35, %v24, 0
  %v43 = vsel %vm35, %v25, 0
  %v46 = vsel %vm35, %v26, 0
  %v49 = vsel %vm35, %v27, 0
  %v52 = vsel %vm35, %v28, 0
  %v55 = vsel %vm35, %v29, 0
  %v58 = vsel %vm35, %v30, 0
  %60 = vmatprep.subr.mxu0 0.0
  %61 = vmatpush1.msra.mxu0 %v11
  %62 = vmatprep.subr.mxu0 0.0
  %63 = vmatpush1.msra.mxu0 %v12
  %64 = vmatprep.subr.mxu0 0.0
  %65 = vmatpush1.msra.mxu0 0.0
  %66 = vmatprep.subr.mxu0 0.0
  %67 = vmatpush1.msra.mxu0 0.0
  %68 = vmatprep.subr.mxu0 0.0
  %69 = vmatpush1.msra.mxu0 0.0
  %70 = vmatprep.subr.mxu0 0.0
  %71 = vmatpush1.msra.mxu0 0.0
  %72 = vmatprep.subr.mxu0 0.0
  %73 = vmatpush1.msra.mxu0 0.0
  %74 = vmatprep.subr.mxu0 0.0
  %75 = vmatpush1.msra.mxu0 0.0
  %76 = vmatprep.subr.mxu0 0.0
  %77 = vmatpush1.msra.mxu0 0.0
  %78 = vmatprep.subr.mxu0 0.0
  %79 = vmatpush1.msra.mxu0 0.0
  %80 = vmatprep.subr.mxu0 0.0
  %81 = vmatpush1.msra.mxu0 0.0
  %82 = vmatprep.subr.mxu0 0.0
  %83 = vmatpush1.msra.mxu0 0.0
  %84 = vmatprep.subr.mxu0 0.0
  %85 = vmatpush1.msra.mxu0 0.0
  %86 = vmatprep.subr.mxu0 0.0
  %87 = vmatpush1.msra.mxu0 0.0
  %88 = vmatprep.subr.mxu0 0.0
  %89 = vmatpush1.msra.mxu0 0.0
  %90 = vmatprep.subr.mxu0 0.0
  %91 = vmatpush1.msra.mxu0 0.0
  %92 = vmatprep.subr.mxu0 0.0
  %93 = vmatpush1.msra.mxu0 0.0
  %94 = vmatprep.subr.mxu0 0.0
  %95 = vmatpush1.msra.mxu0 0.0
  %96 = vmatprep.subr.mxu0 0.0
  %97 = vmatpush1.msra.mxu0 0.0
  %98 = vmatprep.subr.mxu0 0.0
  %99 = vmatpush1.msra.mxu0 0.0
  %100 = vmatprep.subr.mxu0 0.0
  %101 = vmatpush1.msra.mxu0 0.0
  %102 = vmatprep.subr.mxu0 0.0
  %103 = vmatpush1.msra.mxu0 0.0
  %104 = vmatprep.subr.mxu0 0.0
  %105 = vmatpush1.msra.mxu0 0.0
  %106 = vmatprep.subr.mxu0 0.0
  %107 = vmatpush1.msra.mxu0 0.0
  %108 = vmatprep.subr.mxu0 0.0
  %109 = vmatpush1.msra.mxu0 0.0
  %110 = vmatprep.subr.mxu0 0.0
  %111 = vmatpush1.msra.mxu0 0.0
  %112 = vmatprep.subr.mxu0 0.0
  %113 = vmatpush1.msra.mxu0 0.0
  %114 = vmatprep.subr.mxu0 0.0
  %115 = vmatpush1.msra.mxu0 0.0
  %116 = vmatprep.subr.mxu0 0.0
  %117 = vmatpush1.msra.mxu0 0.0
  %118 = vmatprep.subr.mxu0 0.0
  %119 = vmatpush1.msra.mxu0 0.0
  %120 = vmatprep.subr.mxu0 0.0
  %121 = vmatpush1.msra.mxu0 0.0
  %122 = vmatprep.subr.mxu0 0.0
  %123 = vmatpush1.msra.mxu0 0.0
  %124 = vmatprep.mubr.f32.mxu0 0.0
  %125 = vmatmul.mubr.f32.gmra.mrb[0].mxu0 %v37
  %v126 = vpop.f32.mrb[0].mxu0
  %v127 = vadd.f32 %v34, %v126
  %v128 = vpop.f32.mrb[0].mxu0
  %129 = vmatprep.mubr.f32.mxu0 0.0
  %130 = vmatmul.mubr.f32.gmra.mrb[0].mxu0 %v40
  %v131 = vpop.f32.mrb[0].mxu0
  %v132 = vadd.f32 %v34, %v131
  %v133 = vpop.f32.mrb[0].mxu0
  %134 = vmatprep.mubr.f32.mxu0 0.0
  %135 = vmatmul.mubr.f32.gmra.mrb[0].mxu0 %v43
  %v136 = vpop.f32.mrb[0].mxu0
  %v137 = vadd.f32 %v34, %v136
  %v138 = vpop.f32.mrb[0].mxu0
  %139 = vmatprep.mubr.f32.mxu0 0.0
  %140 = vmatmul.mubr.f32.gmra.mrb[0].mxu0 %v46
  %v141 = vpop.f32.mrb[0].mxu0
  %v142 = vadd.f32 %v34, %v141
  %v143 = vpop.f32.mrb[0].mxu0
  %144 = vmatprep.mubr.f32.mxu0 0.0
  %145 = vmatmul.mubr.f32.gmra.mrb[0].mxu0 %v49
  %v146 = vpop.f32.mrb[0].mxu0
  %v147 = vadd.f32 %v34, %v146
  %v148 = vpop.f32.mrb[0].mxu0
  %149 = vmatprep.mubr.f32.mxu0 0.0
  %150 = vmatmul.mubr.f32.gmra.mrb[0].mxu0 %v52
  %v151 = vpop.f32.mrb[0].mxu0
  %v152 = vadd.f32 %v34, %v151
  %v153 = vpop.f32.mrb[0].mxu0
  %154 = vmatprep.mubr.f32.mxu0 0.0
  %155 = vmatmul.mubr.f32.gmra.mrb[0].mxu0 %v55
  %v156 = vpop.f32.mrb[0].mxu0
  %v157 = vadd.f32 %v34, %v156
  %v158 = vpop.f32.mrb[0].mxu0
  %159 = vmatprep.mubr.f32.mxu0 0.0
  %160 = vmatmul.mubr.f32.gmra.mrb[0].mxu0 %v58
  %v161 = vpop.f32.mrb[0].mxu0
  %v162 = vadd.f32 %v34, %v161
  %v163 = vpop.f32.mrb[0].mxu0
  %164 = vdwg.mxu0
  %vm165 = vcmask 261120
  %v167 = vsel %vm165, 0.0, 0
  %169 = vmatprep.subr.mxu0 0.0
  %170 = vmatpush1.msra.mxu0 %v13
  %171 = vmatprep.subr.mxu0 0.0
  %172 = vmatpush1.msra.mxu0 %v14
  %173 = vmatprep.subr.mxu0 0.0
  %174 = vmatpush1.msra.mxu0 %v15
  %175 = vmatprep.subr.mxu0 0.0
  %176 = vmatpush1.msra.mxu0 %v16
  %177 = vmatprep.subr.mxu0 0.0
  %178 = vmatpush1.msra.mxu0 0.0
  %179 = vmatprep.subr.mxu0 0.0
  %180 = vmatpush1.msra.mxu0 0.0
  %181 = vmatprep.subr.mxu0 0.0
  %182 = vmatpush1.msra.mxu0 0.0
  %183 = vmatprep.subr.mxu0 0.0
  %184 = vmatpush1.msra.mxu0 0.0
  %185 = vmatprep.subr.mxu0 0.0
  %186 = vmatpush1.msra.mxu0 0.0
  %187 = vmatprep.subr.mxu0 0.0
  %188 = vmatpush1.msra.mxu0 0.0
  %189 = vmatprep.subr.mxu0 0.0
  %190 = vmatpush1.msra.mxu0 0.0
  %191 = vmatprep.subr.mxu0 0.0
  %192 = vmatpush1.msra.mxu0 0.0
  %193 = vmatprep.subr.mxu0 0.0
  %194 = vmatpush1.msra.mxu0 0.0
  %195 = vmatprep.subr.mxu0 0.0
  %196 = vmatpush1.msra.mxu0 0.0
  %197 = vmatprep.subr.mxu0 0.0
  %198 = vmatpush1.msra.mxu0 0.0
  %199 = vmatprep.subr.mxu0 0.0
  %200 = vmatpush1.msra.mxu0 0.0
  %201 = vmatprep.subr.mxu0 0.0
  %202 = vmatpush1.msra.mxu0 0.0
  %203 = vmatprep.subr.mxu0 0.0
  %204 = vmatpush1.msra.mxu0 0.0
  %205 = vmatprep.subr.mxu0 0.0
  %206 = vmatpush1.msra.mxu0 0.0
  %207 = vmatprep.subr.mxu0 0.0
  %208 = vmatpush1.msra.mxu0 0.0
  %209 = vmatprep.subr.mxu0 0.0
  %210 = vmatpush1.msra.mxu0 0.0
  %211 = vmatprep.subr.mxu0 0.0
  %212 = vmatpush1.msra.mxu0 0.0
  %213 = vmatprep.subr.mxu0 0.0
  %214 = vmatpush1.msra.mxu0 0.0
  %215 = vmatprep.subr.mxu0 0.0
  %216 = vmatpush1.msra.mxu0 0.0
  %217 = vmatprep.subr.mxu0 0.0
  %218 = vmatpush1.msra.mxu0 0.0
  %219 = vmatprep.subr.mxu0 0.0
  %220 = vmatpush1.msra.mxu0 0.0
  %221 = vmatprep.subr.mxu0 0.0
  %222 = vmatpush1.msra.mxu0 0.0
  %223 = vmatprep.subr.mxu0 0.0
  %224 = vmatpush1.msra.mxu0 0.0
  %225 = vmatprep.subr.mxu0 0.0
  %226 = vmatpush1.msra.mxu0 0.0
  %227 = vmatprep.subr.mxu0 0.0
  %228 = vmatpush1.msra.mxu0 0.0
  %229 = vmatprep.subr.mxu0 0.0
  %230 = vmatpush1.msra.mxu0 0.0
  %231 = vmatprep.subr.mxu0 0.0
  %232 = vmatpush1.msra.mxu0 0.0
  %233 = vmatprep.mubr.f32.mxu0 0.0
  %234 = vmatmul.mubr.f32.gmra.mrb[0].mxu0 %v167
  %v235 = vpop.f32.mrb[0].mxu0
  %v236 = vadd.f32 0.0, %v235
  %v237 = vpop.f32.mrb[0].mxu0
  %238 = vdwg.mxu0
  %v239 = vadd.f32 %v127, %v236
  %v240 = vxor.u32 %v239, 2147483648
  %v241 = vmul.f32 %v240, 1.442695
  %v242 = vpow.pop %v241
  %v243 = vadd.f32 %v242, 1.0
  %v244 = vrcp.pop %v243
  %v245 = vmul.f32 1.0, %v244
  %v246 = vmul.f32 %v245, 2.0
  %v247 = vsub.f32 %v246, 1.0
  %v248 = vmul.f32 %v245, 0.0
  %250 = vrot.lane.b32.xlu0 %v247, 64
  %v251 = vpop.permute.xlu0 %250
  %v253 = vmul.f32 %v245, %v251
  %255 = vrot.lane.b32.xlu0 %v253, 32
  %v256 = vpop.permute.xlu0 %255
  %v258 = vadd.f32 %v248, %v256
  %v259 = vtanh.pop %v258
  %261 = vrot.lane.b32.xlu0 %v259, 64
  %v262 = vpop.permute.xlu0 %261
  %v264 = vmul.f32 %v245, %v262
  %266 = vrot.lane.b32.xlu0 %v264, 32
  %v267 = vpop.permute.xlu0 %266
  %v268 = vsel %vm165, %v267, 0
  %270 = vmatprep.subr.mxu0 0.0
  %271 = vmatpush1.msra.mxu0 %v13
  %272 = vmatprep.subr.mxu0 0.0
  %273 = vmatpush1.msra.mxu0 %v14
  %274 = vmatprep.subr.mxu0 0.0
  %275 = vmatpush1.msra.mxu0 %v15
  %276 = vmatprep.subr.mxu0 0.0
  %277 = vmatpush1.msra.mxu0 %v16
  %278 = vmatprep.subr.mxu0 0.0
  %279 = vmatpush1.msra.mxu0 0.0
  %280 = vmatprep.subr.mxu0 0.0
  %281 = vmatpush1.msra.mxu0 0.0
  %282 = vmatprep.subr.mxu0 0.0
  %283 = vmatpush1.msra.mxu0 0.0
  %284 = vmatprep.subr.mxu0 0.0
  %285 = vmatpush1.msra.mxu0 0.0
  %286 = vmatprep.subr.mxu0 0.0
  %287 = vmatpush1.msra.mxu0 0.0
  %288 = vmatprep.subr.mxu0 0.0
  %289 = vmatpush1.msra.mxu0 0.0
  %290 = vmatprep.subr.mxu0 0.0
  %291 = vmatpush1.msra.mxu0 0.0
  %292 = vmatprep.subr.mxu0 0.0
  %293 = vmatpush1.msra.mxu0 0.0
  %294 = vmatprep.subr.mxu0 0.0
  %295 = vmatpush1.msra.mxu0 0.0
  %296 = vmatprep.subr.mxu0 0.0
  %297 = vmatpush1.msra.mxu0 0.0
  %298 = vmatprep.subr.mxu0 0.0
  %299 = vmatpush1.msra.mxu0 0.0
  %300 = vmatprep.subr.mxu0 0.0
  %301 = vmatpush1.msra.mxu0 0.0
  %302 = vmatprep.subr.mxu0 0.0
  %303 = vmatpush1.msra.mxu0 0.0
  %304 = vmatprep.subr.mxu0 0.0
  %305 = vmatpush1.msra.mxu0 0.0
  %306 = vmatprep.subr.mxu0 0.0
  %307 = vmatpush1.msra.mxu0 0.0
  %308 = vmatprep.subr.mxu0 0.0
  %309 = vmatpush1.msra.mxu0 0.0
  %310 = vmatprep.subr.mxu0 0.0
  %311 = vmatpush1.msra.mxu0 0.0
  %312 = vmatprep.subr.mxu0 0.0
  %313 = vmatpush1.msra.mxu0 0.0
  %314 = vmatprep.subr.mxu0 0.0
  %315 = vmatpush1.msra.mxu0 0.0
  %316 = vmatprep.subr.mxu0 0.0
  %317 = vmatpush1.msra.mxu0 0.0
  %318 = vmatprep.subr.mxu0 0.0
  %319 = vmatpush1.msra.mxu0 0.0
  %320 = vmatprep.subr.mxu0 0.0
  %321 = vmatpush1.msra.mxu0 0.0
  %322 = vmatprep.subr.mxu0 0.0
  %323 = vmatpush1.msra.mxu0 0.0
  %324 = vmatprep.subr.mxu0 0.0
  %325 = vmatpush1.msra.mxu0 0.0
  %326 = vmatprep.subr.mxu0 0.0
  %327 = vmatpush1.msra.mxu0 0.0
  %328 = vmatprep.subr.mxu0 0.0
  %329 = vmatpush1.msra.mxu0 0.0
  %330 = vmatprep.subr.mxu0 0.0
  %331 = vmatpush1.msra.mxu0 0.0
  %332 = vmatprep.subr.mxu0 0.0
  %333 = vmatpush1.msra.mxu0 0.0
  %334 = vmatprep.mubr.f32.mxu0 0.0
  %335 = vmatmul.mubr.f32.gmra.mrb[0].mxu0 %v268
  %v336 = vpop.f32.mrb[0].mxu0
  %v337 = vadd.f32 0.0, %v336
  %v338 = vpop.f32.mrb[0].mxu0
  %339 = vdwg.mxu0
  %v340 = vadd.f32 %v132, %v337
  %v341 = vxor.u32 %v340, 2147483648
  %v342 = vmul.f32 %v341, 1.442695
  %v343 = vpow.pop %v342
  %v344 = vadd.f32 %v343, 1.0
  %v345 = vrcp.pop %v344
  %v346 = vmul.f32 1.0, %v345
  %v347 = vmul.f32 %v346, 2.0
  %v348 = vsub.f32 %v347, 1.0
  %v349 = vmul.f32 %v346, %v258
  %351 = vrot.lane.b32.xlu0 %v348, 64
  %v352 = vpop.permute.xlu0 %351
  %v354 = vmul.f32 %v346, %v352
  %356 = vrot.lane.b32.xlu0 %v354, 32
  %v357 = vpop.permute.xlu0 %356
  %v359 = vadd.f32 %v349, %v357
  %v360 = vtanh.pop %v359
  %362 = vrot.lane.b32.xlu0 %v360, 64
  %v363 = vpop.permute.xlu0 %362
  %v365 = vmul.f32 %v346, %v363
  %367 = vrot.lane.b32.xlu0 %v365, 32
  %v368 = vpop.permute.xlu0 %367
  %v369 = vsel %vm165, %v368, 0
  %371 = vmatprep.subr.mxu0 0.0
  %372 = vmatpush1.msra.mxu0 %v13
  %373 = vmatprep.subr.mxu0 0.0
  %374 = vmatpush1.msra.mxu0 %v14
  %375 = vmatprep.subr.mxu0 0.0
  %376 = vmatpush1.msra.mxu0 %v15
  %377 = vmatprep.subr.mxu0 0.0
  %378 = vmatpush1.msra.mxu0 %v16
  %379 = vmatprep.subr.mxu0 0.0
  %380 = vmatpush1.msra.mxu0 0.0
  %381 = vmatprep.subr.mxu0 0.0
  %382 = vmatpush1.msra.mxu0 0.0
  %383 = vmatprep.subr.mxu0 0.0
  %384 = vmatpush1.msra.mxu0 0.0
  %385 = vmatprep.subr.mxu0 0.0
  %386 = vmatpush1.msra.mxu0 0.0
  %387 = vmatprep.subr.mxu0 0.0
  %388 = vmatpush1.msra.mxu0 0.0
  %389 = vmatprep.subr.mxu0 0.0
  %390 = vmatpush1.msra.mxu0 0.0
  %391 = vmatprep.subr.mxu0 0.0
  %392 = vmatpush1.msra.mxu0 0.0
  %393 = vmatprep.subr.mxu0 0.0
  %394 = vmatpush1.msra.mxu0 0.0
  %395 = vmatprep.subr.mxu0 0.0
  %396 = vmatpush1.msra.mxu0 0.0
  %397 = vmatprep.subr.mxu0 0.0
  %398 = vmatpush1.msra.mxu0 0.0
  %399 = vmatprep.subr.mxu0 0.0
  %400 = vmatpush1.msra.mxu0 0.0
  %401 = vmatprep.subr.mxu0 0.0
  %402 = vmatpush1.msra.mxu0 0.0
  %403 = vmatprep.subr.mxu0 0.0
  %404 = vmatpush1.msra.mxu0 0.0
  %405 = vmatprep.subr.mxu0 0.0
  %406 = vmatpush1.msra.mxu0 0.0
  %407 = vmatprep.subr.mxu0 0.0
  %408 = vmatpush1.msra.mxu0 0.0
  %409 = vmatprep.subr.mxu0 0.0
  %410 = vmatpush1.msra.mxu0 0.0
  %411 = vmatprep.subr.mxu0 0.0
  %412 = vmatpush1.msra.mxu0 0.0
  %413 = vmatprep.subr.mxu0 0.0
  %414 = vmatpush1.msra.mxu0 0.0
  %415 = vmatprep.subr.mxu0 0.0
  %416 = vmatpush1.msra.mxu0 0.0
  %417 = vmatprep.subr.mxu0 0.0
  %418 = vmatpush1.msra.mxu0 0.0
  %419 = vmatprep.subr.mxu0 0.0
  %420 = vmatpush1.msra.mxu0 0.0
  %421 = vmatprep.subr.mxu0 0.0
  %422 = vmatpush1.msra.mxu0 0.0
  %423 = vmatprep.subr.mxu0 0.0
  %424 = vmatpush1.msra.mxu0 0.0
  %425 = vmatprep.subr.mxu0 0.0
  %426 = vmatpush1.msra.mxu0 0.0
  %427 = vmatprep.subr.mxu0 0.0
  %428 = vmatpush1.msra.mxu0 0.0
  %429 = vmatprep.subr.mxu0 0.0
  %430 = vmatpush1.msra.mxu0 0.0
  %431 = vmatprep.subr.mxu0 0.0
  %432 = vmatpush1.msra.mxu0 0.0
  %433 = vmatprep.subr.mxu0 0.0
  %434 = vmatpush1.msra.mxu0 0.0
  %435 = vmatprep.mubr.f32.mxu0 0.0
  %436 = vmatmul.mubr.f32.gmra.mrb[0].mxu0 %v369
  %v437 = vpop.f32.mrb[0].mxu0
  %v438 = vadd.f32 0.0, %v437
  %v439 = vpop.f32.mrb[0].mxu0
  %440 = vdwg.mxu0
  %v441 = vadd.f32 %v137, %v438
  %v442 = vxor.u32 %v441, 2147483648
  %v443 = vmul.f32 %v442, 1.442695
  %v444 = vpow.pop %v443
  %v445 = vadd.f32 %v444, 1.0
  %v446 = vrcp.pop %v445
  %v447 = vmul.f32 1.0, %v446
  %v448 = vmul.f32 %v447, 2.0
  %v449 = vsub.f32 %v448, 1.0
  %v450 = vmul.f32 %v447, %v359
  %452 = vrot.lane.b32.xlu0 %v449, 64
  %v453 = vpop.permute.xlu0 %452
  %v455 = vmul.f32 %v447, %v453
  %457 = vrot.lane.b32.xlu0 %v455, 32
  %v458 = vpop.permute.xlu0 %457
  %v460 = vadd.f32 %v450, %v458
  %v461 = vtanh.pop %v460
  %463 = vrot.lane.b32.xlu0 %v461, 64
  %v464 = vpop.permute.xlu0 %463
  %v466 = vmul.f32 %v447, %v464
  %468 = vrot.lane.b32.xlu0 %v466, 32
  %v469 = vpop.permute.xlu0 %468
  %v470 = vsel %vm165, %v469, 0
  %472 = vmatprep.subr.mxu0 0.0
  %473 = vmatpush1.msra.mxu0 %v13
  %474 = vmatprep.subr.mxu0 0.0
  %475 = vmatpush1.msra.mxu0 %v14
  %476 = vmatprep.subr.mxu0 0.0
  %477 = vmatpush1.msra.mxu0 %v15
  %478 = vmatprep.subr.mxu0 0.0
  %479 = vmatpush1.msra.mxu0 %v16
  %480 = vmatprep.subr.mxu0 0.0
  %481 = vmatpush1.msra.mxu0 0.0
  %482 = vmatprep.subr.mxu0 0.0
  %483 = vmatpush1.msra.mxu0 0.0
  %484 = vmatprep.subr.mxu0 0.0
  %485 = vmatpush1.msra.mxu0 0.0
  %486 = vmatprep.subr.mxu0 0.0
  %487 = vmatpush1.msra.mxu0 0.0
  %488 = vmatprep.subr.mxu0 0.0
  %489 = vmatpush1.msra.mxu0 0.0
  %490 = vmatprep.subr.mxu0 0.0
  %491 = vmatpush1.msra.mxu0 0.0
  %492 = vmatprep.subr.mxu0 0.0
  %493 = vmatpush1.msra.mxu0 0.0
  %494 = vmatprep.subr.mxu0 0.0
  %495 = vmatpush1.msra.mxu0 0.0
  %496 = vmatprep.subr.mxu0 0.0
  %497 = vmatpush1.msra.mxu0 0.0
  %498 = vmatprep.subr.mxu0 0.0
  %499 = vmatpush1.msra.mxu0 0.0
  %500 = vmatprep.subr.mxu0 0.0
  %501 = vmatpush1.msra.mxu0 0.0
  %502 = vmatprep.subr.mxu0 0.0
  %503 = vmatpush1.msra.mxu0 0.0
  %504 = vmatprep.subr.mxu0 0.0
  %505 = vmatpush1.msra.mxu0 0.0
  %506 = vmatprep.subr.mxu0 0.0
  %507 = vmatpush1.msra.mxu0 0.0
  %508 = vmatprep.subr.mxu0 0.0
  %509 = vmatpush1.msra.mxu0 0.0
  %510 = vmatprep.subr.mxu0 0.0
  %511 = vmatpush1.msra.mxu0 0.0
  %512 = vmatprep.subr.mxu0 0.0
  %513 = vmatpush1.msra.mxu0 0.0
  %514 = vmatprep.subr.mxu0 0.0
  %515 = vmatpush1.msra.mxu0 0.0
  %516 = vmatprep.subr.mxu0 0.0
  %517 = vmatpush1.msra.mxu0 0.0
  %518 = vmatprep.subr.mxu0 0.0
  %519 = vmatpush1.msra.mxu0 0.0
  %520 = vmatprep.subr.mxu0 0.0
  %521 = vmatpush1.msra.mxu0 0.0
  %522 = vmatprep.subr.mxu0 0.0
  %523 = vmatpush1.msra.mxu0 0.0
  %524 = vmatprep.subr.mxu0 0.0
  %525 = vmatpush1.msra.mxu0 0.0
  %526 = vmatprep.subr.mxu0 0.0
  %527 = vmatpush1.msra.mxu0 0.0
  %528 = vmatprep.subr.mxu0 0.0
  %529 = vmatpush1.msra.mxu0 0.0
  %530 = vmatprep.subr.mxu0 0.0
  %531 = vmatpush1.msra.mxu0 0.0
  %532 = vmatprep.subr.mxu0 0.0
  %533 = vmatpush1.msra.mxu0 0.0
  %534 = vmatprep.subr.mxu0 0.0
  %535 = vmatpush1.msra.mxu0 0.0
  %536 = vmatprep.mubr.f32.mxu0 0.0
  %537 = vmatmul.mubr.f32.gmra.mrb[0].mxu0 %v470
  %v538 = vpop.f32.mrb[0].mxu0
  %v539 = vadd.f32 0.0, %v538
  %v540 = vpop.f32.mrb[0].mxu0
  %541 = vdwg.mxu0
  %v542 = vadd.f32 %v142, %v539
  %v543 = vxor.u32 %v542, 2147483648
  %v544 = vmul.f32 %v543, 1.442695
  %v545 = vpow.pop %v544
  %v546 = vadd.f32 %v545, 1.0
  %v547 = vrcp.pop %v546
  %v548 = vmul.f32 1.0, %v547
  %v549 = vmul.f32 %v548, 2.0
  %v550 = vsub.f32 %v549, 1.0
  %v551 = vmul.f32 %v548, %v460
  %553 = vrot.lane.b32.xlu0 %v550, 64
  %v554 = vpop.permute.xlu0 %553
  %v556 = vmul.f32 %v548, %v554
  %558 = vrot.lane.b32.xlu0 %v556, 32
  %v559 = vpop.permute.xlu0 %558
  %v561 = vadd.f32 %v551, %v559
  %v562 = vtanh.pop %v561
  %564 = vrot.lane.b32.xlu0 %v562, 64
  %v565 = vpop.permute.xlu0 %564
  %v567 = vmul.f32 %v548, %v565
  %569 = vrot.lane.b32.xlu0 %v567, 32
  %v570 = vpop.permute.xlu0 %569
  %v571 = vsel %vm165, %v570, 0
  %573 = vmatprep.subr.mxu0 0.0
  %574 = vmatpush1.msra.mxu0 %v13
  %575 = vmatprep.subr.mxu0 0.0
  %576 = vmatpush1.msra.mxu0 %v14
  %577 = vmatprep.subr.mxu0 0.0
  %578 = vmatpush1.msra.mxu0 %v15
  %579 = vmatprep.subr.mxu0 0.0
  %580 = vmatpush1.msra.mxu0 %v16
  %581 = vmatprep.subr.mxu0 0.0
  %582 = vmatpush1.msra.mxu0 0.0
  %583 = vmatprep.subr.mxu0 0.0
  %584 = vmatpush1.msra.mxu0 0.0
  %585 = vmatprep.subr.mxu0 0.0
  %586 = vmatpush1.msra.mxu0 0.0
  %587 = vmatprep.subr.mxu0 0.0
  %588 = vmatpush1.msra.mxu0 0.0
  %589 = vmatprep.subr.mxu0 0.0
  %590 = vmatpush1.msra.mxu0 0.0
  %591 = vmatprep.subr.mxu0 0.0
  %592 = vmatpush1.msra.mxu0 0.0
  %593 = vmatprep.subr.mxu0 0.0
  %594 = vmatpush1.msra.mxu0 0.0
  %595 = vmatprep.subr.mxu0 0.0
  %596 = vmatpush1.msra.mxu0 0.0
  %597 = vmatprep.subr.mxu0 0.0
  %598 = vmatpush1.msra.mxu0 0.0
  %599 = vmatprep.subr.mxu0 0.0
  %600 = vmatpush1.msra.mxu0 0.0
  %601 = vmatprep.subr.mxu0 0.0
  %602 = vmatpush1.msra.mxu0 0.0
  %603 = vmatprep.subr.mxu0 0.0
  %604 = vmatpush1.msra.mxu0 0.0
  %605 = vmatprep.subr.mxu0 0.0
  %606 = vmatpush1.msra.mxu0 0.0
  %607 = vmatprep.subr.mxu0 0.0
  %608 = vmatpush1.msra.mxu0 0.0
  %609 = vmatprep.subr.mxu0 0.0
  %610 = vmatpush1.msra.mxu0 0.0
  %611 = vmatprep.subr.mxu0 0.0
  %612 = vmatpush1.msra.mxu0 0.0
  %613 = vmatprep.subr.mxu0 0.0
  %614 = vmatpush1.msra.mxu0 0.0
  %615 = vmatprep.subr.mxu0 0.0
  %616 = vmatpush1.msra.mxu0 0.0
  %617 = vmatprep.subr.mxu0 0.0
  %618 = vmatpush1.msra.mxu0 0.0
  %619 = vmatprep.subr.mxu0 0.0
  %620 = vmatpush1.msra.mxu0 0.0
  %621 = vmatprep.subr.mxu0 0.0
  %622 = vmatpush1.msra.mxu0 0.0
  %623 = vmatprep.subr.mxu0 0.0
  %624 = vmatpush1.msra.mxu0 0.0
  %625 = vmatprep.subr.mxu0 0.0
  %626 = vmatpush1.msra.mxu0 0.0
  %627 = vmatprep.subr.mxu0 0.0
  %628 = vmatpush1.msra.mxu0 0.0
  %629 = vmatprep.subr.mxu0 0.0
  %630 = vmatpush1.msra.mxu0 0.0
  %631 = vmatprep.subr.mxu0 0.0
  %632 = vmatpush1.msra.mxu0 0.0
  %633 = vmatprep.subr.mxu0 0.0
  %634 = vmatpush1.msra.mxu0 0.0
  %635 = vmatprep.subr.mxu0 0.0
  %636 = vmatpush1.msra.mxu0 0.0
  %637 = vmatprep.mubr.f32.mxu0 0.0
  %638 = vmatmul.mubr.f32.gmra.mrb[0].mxu0 %v571
  %v639 = vpop.f32.mrb[0].mxu0
  %v640 = vadd.f32 0.0, %v639
  %v641 = vpop.f32.mrb[0].mxu0
  %642 = vdwg.mxu0
  %v643 = vadd.f32 %v147, %v640
  %v644 = vxor.u32 %v643, 2147483648
  %v645 = vmul.f32 %v644, 1.442695
  %v646 = vpow.pop %v645
  %v647 = vadd.f32 %v646, 1.0
  %v648 = vrcp.pop %v647
  %v649 = vmul.f32 1.0, %v648
  %v650 = vmul.f32 %v649, 2.0
  %v651 = vsub.f32 %v650, 1.0
  %v652 = vmul.f32 %v649, %v561
  %654 = vrot.lane.b32.xlu0 %v651, 64
  %v655 = vpop.permute.xlu0 %654
  %v657 = vmul.f32 %v649, %v655
  %659 = vrot.lane.b32.xlu0 %v657, 32
  %v660 = vpop.permute.xlu0 %659
  %v662 = vadd.f32 %v652, %v660
  %v663 = vtanh.pop %v662
  %665 = vrot.lane.b32.xlu0 %v663, 64
  %v666 = vpop.permute.xlu0 %665
  %v668 = vmul.f32 %v649, %v666
  %670 = vrot.lane.b32.xlu0 %v668, 32
  %v671 = vpop.permute.xlu0 %670
  %v672 = vsel %vm165, %v671, 0
  %674 = vmatprep.subr.mxu0 0.0
  %675 = vmatpush1.msra.mxu0 %v13
  %676 = vmatprep.subr.mxu0 0.0
  %677 = vmatpush1.msra.mxu0 %v14
  %678 = vmatprep.subr.mxu0 0.0
  %679 = vmatpush1.msra.mxu0 %v15
  %680 = vmatprep.subr.mxu0 0.0
  %681 = vmatpush1.msra.mxu0 %v16
  %682 = vmatprep.subr.mxu0 0.0
  %683 = vmatpush1.msra.mxu0 0.0
  %684 = vmatprep.subr.mxu0 0.0
  %685 = vmatpush1.msra.mxu0 0.0
  %686 = vmatprep.subr.mxu0 0.0
  %687 = vmatpush1.msra.mxu0 0.0
  %688 = vmatprep.subr.mxu0 0.0
  %689 = vmatpush1.msra.mxu0 0.0
  %690 = vmatprep.subr.mxu0 0.0
  %691 = vmatpush1.msra.mxu0 0.0
  %692 = vmatprep.subr.mxu0 0.0
  %693 = vmatpush1.msra.mxu0 0.0
  %694 = vmatprep.subr.mxu0 0.0
  %695 = vmatpush1.msra.mxu0 0.0
  %696 = vmatprep.subr.mxu0 0.0
  %697 = vmatpush1.msra.mxu0 0.0
  %698 = vmatprep.subr.mxu0 0.0
  %699 = vmatpush1.msra.mxu0 0.0
  %700 = vmatprep.subr.mxu0 0.0
  %701 = vmatpush1.msra.mxu0 0.0
  %702 = vmatprep.subr.mxu0 0.0
  %703 = vmatpush1.msra.mxu0 0.0
  %704 = vmatprep.subr.mxu0 0.0
  %705 = vmatpush1.msra.mxu0 0.0
  %706 = vmatprep.subr.mxu0 0.0
  %707 = vmatpush1.msra.mxu0 0.0
  %708 = vmatprep.subr.mxu0 0.0
  %709 = vmatpush1.msra.mxu0 0.0
  %710 = vmatprep.subr.mxu0 0.0
  %711 = vmatpush1.msra.mxu0 0.0
  %712 = vmatprep.subr.mxu0 0.0
  %713 = vmatpush1.msra.mxu0 0.0
  %714 = vmatprep.subr.mxu0 0.0
  %715 = vmatpush1.msra.mxu0 0.0
  %716 = vmatprep.subr.mxu0 0.0
  %717 = vmatpush1.msra.mxu0 0.0
  %718 = vmatprep.subr.mxu0 0.0
  %719 = vmatpush1.msra.mxu0 0.0
  %720 = vmatprep.subr.mxu0 0.0
  %721 = vmatpush1.msra.mxu0 0.0
  %722 = vmatprep.subr.mxu0 0.0
  %723 = vmatpush1.msra.mxu0 0.0
  %724 = vmatprep.subr.mxu0 0.0
  %725 = vmatpush1.msra.mxu0 0.0
  %726 = vmatprep.subr.mxu0 0.0
  %727 = vmatpush1.msra.mxu0 0.0
  %728 = vmatprep.subr.mxu0 0.0
  %729 = vmatpush1.msra.mxu0 0.0
  %730 = vmatprep.subr.mxu0 0.0
  %731 = vmatpush1.msra.mxu0 0.0
  %732 = vmatprep.subr.mxu0 0.0
  %733 = vmatpush1.msra.mxu0 0.0
  %734 = vmatprep.subr.mxu0 0.0
  %735 = vmatpush1.msra.mxu0 0.0
  %736 = vmatprep.subr.mxu0 0.0
  %737 = vmatpush1.msra.mxu0 0.0
  %738 = vmatprep.mubr.f32.mxu0 0.0
  %739 = vmatmul.mubr.f32.gmra.mrb[0].mxu0 %v672
  %v740 = vpop.f32.mrb[0].mxu0
  %v741 = vadd.f32 0.0, %v740
  %v742 = vpop.f32.mrb[0].mxu0
  %743 = vdwg.mxu0
  %v744 = vadd.f32 %v152, %v741
  %v745 = vxor.u32 %v744, 2147483648
  %v746 = vmul.f32 %v745, 1.442695
  %v747 = vpow.pop %v746
  %v748 = vadd.f32 %v747, 1.0
  %v749 = vrcp.pop %v748
  %v750 = vmul.f32 1.0, %v749
  %v751 = vmul.f32 %v750, 2.0
  %v752 = vsub.f32 %v751, 1.0
  %v753 = vmul.f32 %v750, %v662
  %755 = vrot.lane.b32.xlu0 %v752, 64
  %v756 = vpop.permute.xlu0 %755
  %v758 = vmul.f32 %v750, %v756
  %760 = vrot.lane.b32.xlu0 %v758, 32
  %v761 = vpop.permute.xlu0 %760
  %v763 = vadd.f32 %v753, %v761
  %v764 = vtanh.pop %v763
  %766 = vrot.lane.b32.xlu0 %v764, 64
  %v767 = vpop.permute.xlu0 %766
  %v769 = vmul.f32 %v750, %v767
  %771 = vrot.lane.b32.xlu0 %v769, 32
  %v772 = vpop.permute.xlu0 %771
  %v773 = vsel %vm165, %v772, 0
  %775 = vmatprep.subr.mxu0 0.0
  %776 = vmatpush1.msra.mxu0 %v13
  %777 = vmatprep.subr.mxu0 0.0
  %778 = vmatpush1.msra.mxu0 %v14
  %779 = vmatprep.subr.mxu0 0.0
  %780 = vmatpush1.msra.mxu0 %v15
  %781 = vmatprep.subr.mxu0 0.0
  %782 = vmatpush1.msra.mxu0 %v16
  %783 = vmatprep.subr.mxu0 0.0
  %784 = vmatpush1.msra.mxu0 0.0
  %785 = vmatprep.subr.mxu0 0.0
  %786 = vmatpush1.msra.mxu0 0.0
  %787 = vmatprep.subr.mxu0 0.0
  %788 = vmatpush1.msra.mxu0 0.0
  %789 = vmatprep.subr.mxu0 0.0
  %790 = vmatpush1.msra.mxu0 0.0
  %791 = vmatprep.subr.mxu0 0.0
  %792 = vmatpush1.msra.mxu0 0.0
  %793 = vmatprep.subr.mxu0 0.0
  %794 = vmatpush1.msra.mxu0 0.0
  %795 = vmatprep.subr.mxu0 0.0
  %796 = vmatpush1.msra.mxu0 0.0
  %797 = vmatprep.subr.mxu0 0.0
  %798 = vmatpush1.msra.mxu0 0.0
  %799 = vmatprep.subr.mxu0 0.0
  %800 = vmatpush1.msra.mxu0 0.0
  %801 = vmatprep.subr.mxu0 0.0
  %802 = vmatpush1.msra.mxu0 0.0
  %803 = vmatprep.subr.mxu0 0.0
  %804 = vmatpush1.msra.mxu0 0.0
  %805 = vmatprep.subr.mxu0 0.0
  %806 = vmatpush1.msra.mxu0 0.0
  %807 = vmatprep.subr.mxu0 0.0
  %808 = vmatpush1.msra.mxu0 0.0
  %809 = vmatprep.subr.mxu0 0.0
  %810 = vmatpush1.msra.mxu0 0.0
  %811 = vmatprep.subr.mxu0 0.0
  %812 = vmatpush1.msra.mxu0 0.0
  %813 = vmatprep.subr.mxu0 0.0
  %814 = vmatpush1.msra.mxu0 0.0
  %815 = vmatprep.subr.mxu0 0.0
  %816 = vmatpush1.msra.mxu0 0.0
  %817 = vmatprep.subr.mxu0 0.0
  %818 = vmatpush1.msra.mxu0 0.0
  %819 = vmatprep.subr.mxu0 0.0
  %820 = vmatpush1.msra.mxu0 0.0
  %821 = vmatprep.subr.mxu0 0.0
  %822 = vmatpush1.msra.mxu0 0.0
  %823 = vmatprep.subr.mxu0 0.0
  %824 = vmatpush1.msra.mxu0 0.0
  %825 = vmatprep.subr.mxu0 0.0
  %826 = vmatpush1.msra.mxu0 0.0
  %827 = vmatprep.subr.mxu0 0.0
  %828 = vmatpush1.msra.mxu0 0.0
  %829 = vmatprep.subr.mxu0 0.0
  %830 = vmatpush1.msra.mxu0 0.0
  %831 = vmatprep.subr.mxu0 0.0
  %832 = vmatpush1.msra.mxu0 0.0
  %833 = vmatprep.subr.mxu0 0.0
  %834 = vmatpush1.msra.mxu0 0.0
  %835 = vmatprep.subr.mxu0 0.0
  %836 = vmatpush1.msra.mxu0 0.0
  %837 = vmatprep.subr.mxu0 0.0
  %838 = vmatpush1.msra.mxu0 0.0
  %839 = vmatprep.mubr.f32.mxu0 0.0
  %840 = vmatmul.mubr.f32.gmra.mrb[0].mxu0 %v773
  %v841 = vpop.f32.mrb[0].mxu0
  %v842 = vadd.f32 0.0, %v841
  %v843 = vpop.f32.mrb[0].mxu0
  %844 = vdwg.mxu0
  %v845 = vadd.f32 %v157, %v842
  %v846 = vxor.u32 %v845, 2147483648
  %v847 = vmul.f32 %v846, 1.442695
  %v848 = vpow.pop %v847
  %v849 = vadd.f32 %v848, 1.0
  %v850 = vrcp.pop %v849
  %v851 = vmul.f32 1.0, %v850
  %v852 = vmul.f32 %v851, 2.0
  %v853 = vsub.f32 %v852, 1.0
  %v854 = vmul.f32 %v851, %v763
  %856 = vrot.lane.b32.xlu0 %v853, 64
  %v857 = vpop.permute.xlu0 %856
  %v859 = vmul.f32 %v851, %v857
  %861 = vrot.lane.b32.xlu0 %v859, 32
  %v862 = vpop.permute.xlu0 %861
  %v864 = vadd.f32 %v854, %v862
  %v865 = vtanh.pop %v864
  %867 = vrot.lane.b32.xlu0 %v865, 64
  %v868 = vpop.permute.xlu0 %867
  %v870 = vmul.f32 %v851, %v868
  %872 = vrot.lane.b32.xlu0 %v870, 32
  %v873 = vpop.permute.xlu0 %872
  %v874 = vsel %vm165, %v873, 0
  %876 = vmatprep.subr.mxu0 0.0
  %877 = vmatpush1.msra.mxu0 %v13
  %878 = vmatprep.subr.mxu0 0.0
  %879 = vmatpush1.msra.mxu0 %v14
  %880 = vmatprep.subr.mxu0 0.0
  %881 = vmatpush1.msra.mxu0 %v15
  %882 = vmatprep.subr.mxu0 0.0
  %883 = vmatpush1.msra.mxu0 %v16
  %884 = vmatprep.subr.mxu0 0.0
  %885 = vmatpush1.msra.mxu0 0.0
  %886 = vmatprep.subr.mxu0 0.0
  %887 = vmatpush1.msra.mxu0 0.0
  %888 = vmatprep.subr.mxu0 0.0
  %889 = vmatpush1.msra.mxu0 0.0
  %890 = vmatprep.subr.mxu0 0.0
  %891 = vmatpush1.msra.mxu0 0.0
  %892 = vmatprep.subr.mxu0 0.0
  %893 = vmatpush1.msra.mxu0 0.0
  %894 = vmatprep.subr.mxu0 0.0
  %895 = vmatpush1.msra.mxu0 0.0
  %896 = vmatprep.subr.mxu0 0.0
  %897 = vmatpush1.msra.mxu0 0.0
  %898 = vmatprep.subr.mxu0 0.0
  %899 = vmatpush1.msra.mxu0 0.0
  %900 = vmatprep.subr.mxu0 0.0
  %901 = vmatpush1.msra.mxu0 0.0
  %902 = vmatprep.subr.mxu0 0.0
  %903 = vmatpush1.msra.mxu0 0.0
  %904 = vmatprep.subr.mxu0 0.0
  %905 = vmatpush1.msra.mxu0 0.0
  %906 = vmatprep.subr.mxu0 0.0
  %907 = vmatpush1.msra.mxu0 0.0
  %908 = vmatprep.subr.mxu0 0.0
  %909 = vmatpush1.msra.mxu0 0.0
  %910 = vmatprep.subr.mxu0 0.0
  %911 = vmatpush1.msra.mxu0 0.0
  %912 = vmatprep.subr.mxu0 0.0
  %913 = vmatpush1.msra.mxu0 0.0
  %914 = vmatprep.subr.mxu0 0.0
  %915 = vmatpush1.msra.mxu0 0.0
  %916 = vmatprep.subr.mxu0 0.0
  %917 = vmatpush1.msra.mxu0 0.0
  %918 = vmatprep.subr.mxu0 0.0
  %919 = vmatpush1.msra.mxu0 0.0
  %920 = vmatprep.subr.mxu0 0.0
  %921 = vmatpush1.msra.mxu0 0.0
  %922 = vmatprep.subr.mxu0 0.0
  %923 = vmatpush1.msra.mxu0 0.0
  %924 = vmatprep.subr.mxu0 0.0
  %925 = vmatpush1.msra.mxu0 0.0
  %926 = vmatprep.subr.mxu0 0.0
  %927 = vmatpush1.msra.mxu0 0.0
  %928 = vmatprep.subr.mxu0 0.0
  %929 = vmatpush1.msra.mxu0 0.0
  %930 = vmatprep.subr.mxu0 0.0
  %931 = vmatpush1.msra.mxu0 0.0
  %932 = vmatprep.subr.mxu0 0.0
  %933 = vmatpush1.msra.mxu0 0.0
  %934 = vmatprep.subr.mxu0 0.0
  %935 = vmatpush1.msra.mxu0 0.0
  %936 = vmatprep.subr.mxu0 0.0
  %937 = vmatpush1.msra.mxu0 0.0
  %938 = vmatprep.subr.mxu0 0.0
  %939 = vmatpush1.msra.mxu0 0.0
  %940 = vmatprep.mubr.f32.mxu0 0.0
  %941 = vmatmul.mubr.f32.gmra.mrb[0].mxu0 %v874
  %v942 = vpop.f32.mrb[0].mxu0
  %v943 = vadd.f32 0.0, %v942
  %v944 = vpop.f32.mrb[0].mxu0
  %945 = vdwg.mxu0
  %v946 = vadd.f32 %v162, %v943
  %v947 = vxor.u32 %v946, 2147483648
  %v948 = vmul.f32 %v947, 1.442695
  %v949 = vpow.pop %v948
  %v950 = vadd.f32 %v949, 1.0
  %v951 = vrcp.pop %v950
  %v952 = vmul.f32 1.0, %v951
  %v953 = vmul.f32 %v952, 2.0
  %v954 = vsub.f32 %v953, 1.0
  %v955 = vmul.f32 %v952, %v864
  %957 = vrot.lane.b32.xlu0 %v954, 64
  %v958 = vpop.permute.xlu0 %957
  %v960 = vmul.f32 %v952, %v958
  %962 = vrot.lane.b32.xlu0 %v960, 32
  %v963 = vpop.permute.xlu0 %962
  %v965 = vadd.f32 %v955, %v963
  %v966 = vtanh.pop %v965
  %968 = vrot.lane.b32.xlu0 %v966, 64
  %v969 = vpop.permute.xlu0 %968
  %v971 = vmul.f32 %v952, %v969
  %v972 = vlaneseq
  %v973 = vshrl.u32 %v972, 7
  %v974 = vsub.s32 0, %v973
  %v975 = vrot.slane %v22, %v974
  %977 = vrot.lane.b32.xlu0 %v971, 32
  %v978 = vpop.permute.xlu0 %977
  %v979 = vsel %vm165, %v978, 0
  %981 = vmatprep.subr.mxu0 0.0
  %982 = vmatpush1.msra.mxu0 %v18
  %983 = vmatprep.subr.mxu0 0.0
  %984 = vmatpush1.msra.mxu0 %v19
  %985 = vmatprep.subr.mxu0 0.0
  %986 = vmatpush1.msra.mxu0 %v20
  %987 = vmatprep.subr.mxu0 0.0
  %988 = vmatpush1.msra.mxu0 %v21
  %989 = vmatprep.subr.mxu0 0.0
  %990 = vmatpush1.msra.mxu0 0.0
  %991 = vmatprep.subr.mxu0 0.0
  %992 = vmatpush1.msra.mxu0 0.0
  %993 = vmatprep.subr.mxu0 0.0
  %994 = vmatpush1.msra.mxu0 0.0
  %995 = vmatprep.subr.mxu0 0.0
  %996 = vmatpush1.msra.mxu0 0.0
  %997 = vmatprep.subr.mxu0 0.0
  %998 = vmatpush1.msra.mxu0 0.0
  %999 = vmatprep.subr.mxu0 0.0
  %1000 = vmatpush1.msra.mxu0 0.0
  %1001 = vmatprep.subr.mxu0 0.0
  %1002 = vmatpush1.msra.mxu0 0.0
  %1003 = vmatprep.subr.mxu0 0.0
  %1004 = vmatpush1.msra.mxu0 0.0
  %1005 = vmatprep.subr.mxu0 0.0
  %1006 = vmatpush1.msra.mxu0 0.0
  %1007 = vmatprep.subr.mxu0 0.0
  %1008 = vmatpush1.msra.mxu0 0.0
  %1009 = vmatprep.subr.mxu0 0.0
  %1010 = vmatpush1.msra.mxu0 0.0
  %1011 = vmatprep.subr.mxu0 0.0
  %1012 = vmatpush1.msra.mxu0 0.0
  %1013 = vmatprep.subr.mxu0 0.0
  %1014 = vmatpush1.msra.mxu0 0.0
  %1015 = vmatprep.subr.mxu0 0.0
  %1016 = vmatpush1.msra.mxu0 0.0
  %1017 = vmatprep.subr.mxu0 0.0
  %1018 = vmatpush1.msra.mxu0 0.0
  %1019 = vmatprep.subr.mxu0 0.0
  %1020 = vmatpush1.msra.mxu0 0.0
  %1021 = vmatprep.subr.mxu0 0.0
  %1022 = vmatpush1.msra.mxu0 0.0
  %1023 = vmatprep.subr.mxu0 0.0
  %1024 = vmatpush1.msra.mxu0 0.0
  %1025 = vmatprep.subr.mxu0 0.0
  %1026 = vmatpush1.msra.mxu0 0.0
  %1027 = vmatprep.subr.mxu0 0.0
  %1028 = vmatpush1.msra.mxu0 0.0
  %1029 = vmatprep.subr.mxu0 0.0
  %1030 = vmatpush1.msra.mxu0 0.0
  %1031 = vmatprep.subr.mxu0 0.0
  %1032 = vmatpush1.msra.mxu0 0.0
  %1033 = vmatprep.subr.mxu0 0.0
  %1034 = vmatpush1.msra.mxu0 0.0
  %1035 = vmatprep.subr.mxu0 0.0
  %1036 = vmatpush1.msra.mxu0 0.0
  %1037 = vmatprep.subr.mxu0 0.0
  %1038 = vmatpush1.msra.mxu0 0.0
  %1039 = vmatprep.subr.mxu0 0.0
  %1040 = vmatpush1.msra.mxu0 0.0
  %1041 = vmatprep.subr.mxu0 0.0
  %1042 = vmatpush1.msra.mxu0 0.0
  %1043 = vmatprep.subr.mxu0 0.0
  %1044 = vmatpush1.msra.mxu0 0.0
  %1045 = vmatprep.mubr.f32.mxu0 0.0
  %1046 = vmatmul.mubr.f32.gmra.mrb[0].mxu0 %v979
  %v1047 = vpop.f32.mrb[0].mxu0
  %v1048 = vadd.f32 %v975, %v1047
  %v1049 = vpop.f32.mrb[0].mxu0
  %1050 = vdwg.mxu0
  %1051 = vst [vmem:[%s2] sm:$0xff] %v1048
  // Predicated region
  $region10: #{net_forward.1} parent=0 // pred_check
    _
  $region11: #{net_forward.1} parent=0 // pred_check_branch
    %1053 = sbr.rel (0) target = $region13
  $region12: #{net_forward.1} parent=0 // pred_region
    _
  $region13: #{net_forward.1} parent=0 // pred_fallthru
    _
  // Predicated region
  $region14: #{net_forward.1} parent=0 // pred_check
    _
  $region15: #{net_forward.1} parent=0 // pred_check_branch
    %1055 = sbr.rel (0) target = $region17
  $region16: #{net_forward.1} parent=0 // pred_region
    _
  $region17: #{net_forward.1} parent=0 // pred_fallthru
    _

</llo_original>
